<compile_context>
chip_gen: v7x
topology: tpu7x:2x2x1
jax: 0.10.0
libtpu: 0.0.40
codegen_flags: <defaults>
</compile_context>

<pallas_src>
import jax
import jax.numpy as jnp
from jax.experimental import pallas as pl
from jax.experimental.pallas import tpu as pltpu

LN_EPS = 1e-6       # LayerNorm2d eps
NORM_EPS = 1e-12    # F.normalize eps


def ifte_kernel(xd_ref, xs_ref, lnd_w_ref, lnd_b_ref, lns_w_ref, lns_b_ref,
                qk_w_ref, v_w_ref, proj_w_ref, alpha_ref, o_ref):
    bt, c, hw = o_ref.shape

    # weights / scalars loaded once per grid step (hoisted out of the batch loop)
    lnd_w = lnd_w_ref[...]
    lnd_b = lnd_b_ref[...]
    lns_w = lns_w_ref[...]
    lns_b = lns_b_ref[...]
    qk_w = qk_w_ref[...]        # (2C, 2C)
    v_w = v_w_ref[...]          # (C, 2C)
    proj_w = proj_w_ref[...]    # (C, C)
    alpha = alpha_ref[0]        # scalar, lives in SMEM

    def layernorm2d(x, w, b):
        # normalize over the channel axis (axis 0) per spatial location
        mu = jnp.mean(x, axis=0, keepdims=True)
        var = jnp.mean((x - mu) ** 2, axis=0, keepdims=True)
        y = (x - mu) * jax.lax.rsqrt(var + LN_EPS)   # rsqrt -> EUP slot
        return w * y + b                              # w, b: (C, 1)

    # static (unrolled) loop over the batch sub-tile; each iteration is pure 2D.
    for i in range(bt):
        xd = xd_ref[i].astype(jnp.float32)   # (C, HW)
        xs = xs_ref[i].astype(jnp.float32)   # (C, HW)

        yd = layernorm2d(xd, lnd_w, lnd_b)   # (C, HW)
        ys = layernorm2d(xs, lns_w, lns_b)   # (C, HW)

        # AdaptiveAvgPool2d(1) of concat([yd, ys]) without materializing the concat
        pooled = jnp.concatenate(
            [jnp.mean(yd, axis=1, keepdims=True),
             jnp.mean(ys, axis=1, keepdims=True)], axis=0)          # (2C, 1)

        # 1x1 conv on pooled features == channel matmul (tiny)
        qk = jnp.dot(qk_w, pooled, preferred_element_type=jnp.float32)   # (2C, 1)
        q = qk[:c]                                                       # (C, 1)
        k = qk[c:]                                                       # (C, 1)

        # F.normalize(dim=-1) over a size-1 axis: x / max(|x|, eps)
        qn = q / jnp.maximum(jnp.abs(q), NORM_EPS)
        kn = k / jnp.maximum(jnp.abs(k), NORM_EPS)

        # attn = softmax(alpha * q @ k^T). q k^T is a rank-1 outer product:
        # do it on the VPU (broadcast multiply) instead of a degenerate K=1 MXU op.
        scores = (qn * jnp.transpose(kn)) * alpha                    # (C, C)
        m = jnp.max(scores, axis=-1, keepdims=True)
        e = jnp.exp(scores - m)
        attn = e / jnp.sum(e, axis=-1, keepdims=True)                # (C, C)

        # Fold proj_out @ attn @ v_w into one small (C, 2C) weight, then apply it
        # with a single pass over the HW-sized activations (split over yd / ys so
        # the (2C, HW) concat never exists).
        w_fused = jnp.dot(
            jnp.dot(proj_w, attn, preferred_element_type=jnp.float32),
            v_w, preferred_element_type=jnp.float32)                 # (C, 2C)

        out_i = (jnp.dot(w_fused[:, :c], yd, preferred_element_type=jnp.float32)
                 + jnp.dot(w_fused[:, c:], ys, preferred_element_type=jnp.float32))
        o_ref[i] = out_i.astype(o_ref.dtype)


def _choose_batch_tile(b, c, hw, itemsize=4, budget_bytes=8 << 20):
    """Pick how many batch elements to process per grid step.

    Budget is conservative (well under the 32 MiB default scoped VMEM on all
    generations, and under v7x's 64 MiB physical VMEM): double-buffered
    xd/xs/out blocks plus the f32 LN copies per sample.
    """
    per_sample = max(1, c * hw * itemsize * 10)
    max_bt = max(1, budget_bytes // per_sample)
    bt = 1
    for cand in range(1, b + 1):
        if b % cand == 0 and cand <= max_bt:
            bt = cand
    # keep >= 2 grid steps when the batch allows, so both v7x TensorCores get work
    if b >= 2 and b // bt < 2:
        divisors = [d for d in range(1, bt) if b % d == 0]
        if divisors:
            bt = max(divisors)
    return bt


def ifte_forward(x_dec, x_skip, params, *, batch_tile=None):
    b, c, h, w = x_dec.shape
    hw = h * w
    xd = x_dec.reshape(b, c, hw)
    xs = x_skip.reshape(b, c, hw)

    bt = batch_tile or _choose_batch_tile(b, c, hw, xd.dtype.itemsize)
    assert b % bt == 0, "batch tile must divide batch"

    lnd_w = params["ln_dec_w"].reshape(c, 1).astype(jnp.float32)
    lnd_b = params["ln_dec_b"].reshape(c, 1).astype(jnp.float32)
    lns_w = params["ln_skip_w"].reshape(c, 1).astype(jnp.float32)
    lns_b = params["ln_skip_b"].reshape(c, 1).astype(jnp.float32)
    qk_w = params["qk_w"].astype(jnp.float32)        # (2C, 2C)
    v_w = params["v_w"].astype(jnp.float32)          # (C, 2C)
    proj_w = params["proj_w"].astype(jnp.float32)    # (C, C)
    alpha = params["alpha"].reshape(1).astype(jnp.float32)   # scalar -> SMEM

    def full_spec(shape):
        return pl.BlockSpec(shape, lambda i, _n=len(shape): (0,) * _n)

    grid_spec = pltpu.PrefetchScalarGridSpec(
        num_scalar_prefetch=0,
        grid=(b // bt,),
        in_specs=[
            pl.BlockSpec((bt, c, hw), lambda i: (i, 0, 0)),   # x_dec tile
            pl.BlockSpec((bt, c, hw), lambda i: (i, 0, 0)),   # x_skip tile
            full_spec((c, 1)), full_spec((c, 1)),             # ln_dec w, b
            full_spec((c, 1)), full_spec((c, 1)),             # ln_skip w, b
            full_spec((2 * c, 2 * c)),                        # qk weight
            full_spec((c, 2 * c)),                            # v weight
            full_spec((c, c)),                                # proj weight
            pl.BlockSpec(memory_space=pltpu.MemorySpace.SMEM),  # alpha (scalar)
        ],
        out_specs=pl.BlockSpec((bt, c, hw), lambda i: (i, 0, 0)),
    )

    out = pl.pallas_call(
        ifte_kernel,
        out_shape=jax.ShapeDtypeStruct((b, c, hw), x_dec.dtype),
        grid_spec=grid_spec,
        compiler_params=pltpu.CompilerParams(dimension_semantics=("parallel",)),
    )(xd, xs, lnd_w, lnd_b, lns_w, lns_b, qk_w, v_w, proj_w, alpha)
    return out.reshape(b, c, h, w)


def ifte_reference(x_dec, x_skip, p):
    # Pure-JAX reference mirroring the PyTorch forward (NCHW).
    def ln(x, w, b):
        mu = x.mean(1, keepdims=True)
        var = ((x - mu) ** 2).mean(1, keepdims=True)
        y = (x - mu) / jnp.sqrt(var + LN_EPS)
        return w[None, :, None, None] * y + b[None, :, None, None]

    b, c, h, w = x_dec.shape
    xd = ln(x_dec, p["ln_dec_w"], p["ln_dec_b"])
    xs = ln(x_skip, p["ln_skip_w"], p["ln_skip_b"])
    x = jnp.concatenate([xd, xs], axis=1)                       # (B, 2C, H, W)
    pooled = x.mean(axis=(2, 3))                                # (B, 2C)
    qk = pooled @ p["qk_w"].T                                   # (B, 2C)
    q, k = qk[:, :c, None], qk[:, c:, None]                     # (B, C, 1)
    v = jnp.einsum("oc,bchw->bohw", p["v_w"], x).reshape(b, c, h * w)
    q = q / jnp.maximum(jnp.abs(q), NORM_EPS)
    k = k / jnp.maximum(jnp.abs(k), NORM_EPS)
    attn = jnp.einsum("bci,bdi->bcd", q, k) * p["alpha"][0]
    attn = jax.nn.softmax(attn, axis=-1)
    out = jnp.einsum("bcd,bds->bcs", attn, v).reshape(b, c, h, w)
    out = jnp.einsum("oc,bchw->bohw", p["proj_w"], out)
    return out


if __name__ == "__main__":
    b, dim, h, w = 2, 4, 16, 16
    key = jax.random.PRNGKey(0)
    k_xd, k_xs, k_qk, k_v, k_proj = jax.random.split(key, 5)

    x_dec = jax.random.normal(k_xd, (b, dim, h, w), jnp.float32)
    x_skip = jax.random.normal(k_xs, (b, dim, h, w), jnp.float32)

    params = {
        "alpha": jnp.ones((1,), jnp.float32),
        "ln_dec_w": jnp.ones((dim,), jnp.float32),
        "ln_dec_b": jnp.zeros((dim,), jnp.float32),
        "ln_skip_w": jnp.ones((dim,), jnp.float32),
        "ln_skip_b": jnp.zeros((dim,), jnp.float32),
        # deterministic synthetic conv weights (1x1 convs -> dense matrices)
        "qk_w": jax.random.normal(k_qk, (2 * dim, 2 * dim), jnp.float32)
                / jnp.sqrt(2.0 * dim),
        "v_w": jax.random.normal(k_v, (dim, 2 * dim), jnp.float32)
               / jnp.sqrt(2.0 * dim),
        "proj_w": jax.random.normal(k_proj, (dim, dim), jnp.float32)
                  / jnp.sqrt(1.0 * dim),
    }

    out = ifte_forward(x_dec, x_skip, params)
    jax.block_until_ready(out)

    ref = ifte_reference(x_dec, x_skip, params)
    assert out.shape == (b, dim, h, w)
    assert jnp.allclose(out, ref, atol=1e-4, rtol=1e-4), "kernel != reference"

    print("KERNEL_OK")
</pallas_src>

<mosaic_0001>
module attributes {stable_mosaic.version = 11 : i64} {
  func.func @ifte_kernel(%arg0: i32, %arg1: memref<1x4x256xf32, #tpu.memory_space<vmem>>, %arg2: memref<1x4x256xf32, #tpu.memory_space<vmem>>, %arg3: memref<4x1xf32, #tpu.memory_space<vmem>>, %arg4: memref<4x1xf32, #tpu.memory_space<vmem>>, %arg5: memref<4x1xf32, #tpu.memory_space<vmem>>, %arg6: memref<4x1xf32, #tpu.memory_space<vmem>>, %arg7: memref<8x8xf32, #tpu.memory_space<vmem>>, %arg8: memref<4x8xf32, #tpu.memory_space<vmem>>, %arg9: memref<4x4xf32, #tpu.memory_space<vmem>>, %arg10: memref<1xf32, #tpu.memory_space<smem>>, %arg11: memref<1x4x256xf32, #tpu.memory_space<vmem>>) attributes {dimension_semantics = [#tpu.dimension_semantics<parallel>], iteration_bounds = array<i64: 2>, scalar_prefetch = 0 : i64, scratch_operands = 0 : i64, tpu.core_type = #tpu.core_type<tc>, window_params = [{transform_indices = @transform_0, window_bounds = array<i64: 1, 4, 256>}, {transform_indices = @transform_1, window_bounds = array<i64: 1, 4, 256>}, {pipeline_mode = #tpu.pipeline_mode<synchronous>, transform_indices = @transform_2, window_bounds = array<i64: 4, 1>}, {pipeline_mode = #tpu.pipeline_mode<synchronous>, transform_indices = @transform_3, window_bounds = array<i64: 4, 1>}, {pipeline_mode = #tpu.pipeline_mode<synchronous>, transform_indices = @transform_4, window_bounds = array<i64: 4, 1>}, {pipeline_mode = #tpu.pipeline_mode<synchronous>, transform_indices = @transform_5, window_bounds = array<i64: 4, 1>}, {pipeline_mode = #tpu.pipeline_mode<synchronous>, transform_indices = @transform_6, window_bounds = array<i64: 8, 8>}, {pipeline_mode = #tpu.pipeline_mode<synchronous>, transform_indices = @transform_7, window_bounds = array<i64: 4, 8>}, {pipeline_mode = #tpu.pipeline_mode<synchronous>, transform_indices = @transform_8, window_bounds = array<i64: 4, 4>}, {transform_indices = @transform_9, window_bounds = array<i64: 1>}, {transform_indices = @transform_10, window_bounds = array<i64: 1, 4, 256>}]} {
    %c0 = arith.constant 0 : index
    %c0_0 = arith.constant 0 : index
    %0 = vector.load %arg3[%c0, %c0_0] : memref<4x1xf32, #tpu.memory_space<vmem>>, vector<4x1xf32>
    %c0_1 = arith.constant 0 : index
    %c0_2 = arith.constant 0 : index
    %1 = vector.load %arg4[%c0_1, %c0_2] : memref<4x1xf32, #tpu.memory_space<vmem>>, vector<4x1xf32>
    %c0_3 = arith.constant 0 : index
    %c0_4 = arith.constant 0 : index
    %2 = vector.load %arg5[%c0_3, %c0_4] : memref<4x1xf32, #tpu.memory_space<vmem>>, vector<4x1xf32>
    %c0_5 = arith.constant 0 : index
    %c0_6 = arith.constant 0 : index
    %3 = vector.load %arg6[%c0_5, %c0_6] : memref<4x1xf32, #tpu.memory_space<vmem>>, vector<4x1xf32>
    %c0_7 = arith.constant 0 : index
    %c0_8 = arith.constant 0 : index
    %4 = vector.load %arg7[%c0_7, %c0_8] : memref<8x8xf32, #tpu.memory_space<vmem>>, vector<8x8xf32>
    %c0_9 = arith.constant 0 : index
    %c0_10 = arith.constant 0 : index
    %5 = vector.load %arg8[%c0_9, %c0_10] : memref<4x8xf32, #tpu.memory_space<vmem>>, vector<4x8xf32>
    %c0_11 = arith.constant 0 : index
    %c0_12 = arith.constant 0 : index
    %6 = vector.load %arg9[%c0_11, %c0_12] : memref<4x4xf32, #tpu.memory_space<vmem>>, vector<4x4xf32>
    %c0_13 = arith.constant 0 : index
    %7 = memref.load %arg10[%c0_13] : memref<1xf32, #tpu.memory_space<smem>>
    %c0_14 = arith.constant 0 : index
    %c0_15 = arith.constant 0 : index
    %c0_16 = arith.constant 0 : index
    %8 = vector.load %arg1[%c0_14, %c0_15, %c0_16] : memref<1x4x256xf32, #tpu.memory_space<vmem>>, vector<1x4x256xf32>
    %9 = vector.shape_cast %8 : vector<1x4x256xf32> to vector<4x256xf32>
    %c0_17 = arith.constant 0 : index
    %c0_18 = arith.constant 0 : index
    %c0_19 = arith.constant 0 : index
    %10 = vector.load %arg2[%c0_17, %c0_18, %c0_19] : memref<1x4x256xf32, #tpu.memory_space<vmem>>, vector<1x4x256xf32>
    %11 = vector.shape_cast %10 : vector<1x4x256xf32> to vector<4x256xf32>
    %cst = arith.constant dense<0.000000e+00> : vector<256xf32>
    %12 = vector.multi_reduction <add>, %9, %cst [0] : vector<4x256xf32> to vector<256xf32>
    %13 = vector.shape_cast %12 : vector<256xf32> to vector<1x256xf32>
    %cst_20 = arith.constant 4.000000e+00 : f32
    %14 = vector.broadcast %cst_20 : f32 to vector<1x256xf32>
    %15 = arith.divf %13, %14 : vector<1x256xf32>
    %16 = vector.broadcast %15 : vector<1x256xf32> to vector<4x256xf32>
    %17 = arith.subf %9, %16 : vector<4x256xf32>
    %18 = arith.mulf %17, %17 : vector<4x256xf32>
    %cst_21 = arith.constant dense<0.000000e+00> : vector<256xf32>
    %19 = vector.multi_reduction <add>, %18, %cst_21 [0] : vector<4x256xf32> to vector<256xf32>
    %20 = vector.shape_cast %19 : vector<256xf32> to vector<1x256xf32>
    %cst_22 = arith.constant 4.000000e+00 : f32
    %21 = vector.broadcast %cst_22 : f32 to vector<1x256xf32>
    %22 = arith.divf %20, %21 : vector<1x256xf32>
    %23 = vector.broadcast %15 : vector<1x256xf32> to vector<4x256xf32>
    %24 = arith.subf %9, %23 : vector<4x256xf32>
    %cst_23 = arith.constant 9.99999997E-7 : f32
    %25 = vector.broadcast %cst_23 : f32 to vector<1x256xf32>
    %26 = arith.addf %22, %25 : vector<1x256xf32>
    %27 = math.rsqrt %26 : vector<1x256xf32>
    %28 = vector.broadcast %27 : vector<1x256xf32> to vector<4x256xf32>
    %29 = arith.mulf %24, %28 : vector<4x256xf32>
    %30 = vector.broadcast %0 : vector<4x1xf32> to vector<4x256xf32>
    %31 = arith.mulf %30, %29 : vector<4x256xf32>
    %32 = vector.broadcast %1 : vector<4x1xf32> to vector<4x256xf32>
    %33 = arith.addf %31, %32 : vector<4x256xf32>
    %cst_24 = arith.constant dense<0.000000e+00> : vector<256xf32>
    %34 = vector.multi_reduction <add>, %11, %cst_24 [0] : vector<4x256xf32> to vector<256xf32>
    %35 = vector.shape_cast %34 : vector<256xf32> to vector<1x256xf32>
    %cst_25 = arith.constant 4.000000e+00 : f32
    %36 = vector.broadcast %cst_25 : f32 to vector<1x256xf32>
    %37 = arith.divf %35, %36 : vector<1x256xf32>
    %38 = vector.broadcast %37 : vector<1x256xf32> to vector<4x256xf32>
    %39 = arith.subf %11, %38 : vector<4x256xf32>
    %40 = arith.mulf %39, %39 : vector<4x256xf32>
    %cst_26 = arith.constant dense<0.000000e+00> : vector<256xf32>
    %41 = vector.multi_reduction <add>, %40, %cst_26 [0] : vector<4x256xf32> to vector<256xf32>
    %42 = vector.shape_cast %41 : vector<256xf32> to vector<1x256xf32>
    %cst_27 = arith.constant 4.000000e+00 : f32
    %43 = vector.broadcast %cst_27 : f32 to vector<1x256xf32>
    %44 = arith.divf %42, %43 : vector<1x256xf32>
    %45 = vector.broadcast %37 : vector<1x256xf32> to vector<4x256xf32>
    %46 = arith.subf %11, %45 : vector<4x256xf32>
    %cst_28 = arith.constant 9.99999997E-7 : f32
    %47 = vector.broadcast %cst_28 : f32 to vector<1x256xf32>
    %48 = arith.addf %44, %47 : vector<1x256xf32>
    %49 = math.rsqrt %48 : vector<1x256xf32>
    %50 = vector.broadcast %49 : vector<1x256xf32> to vector<4x256xf32>
    %51 = arith.mulf %46, %50 : vector<4x256xf32>
    %52 = vector.broadcast %2 : vector<4x1xf32> to vector<4x256xf32>
    %53 = arith.mulf %52, %51 : vector<4x256xf32>
    %54 = vector.broadcast %3 : vector<4x1xf32> to vector<4x256xf32>
    %55 = arith.addf %53, %54 : vector<4x256xf32>
    %cst_29 = arith.constant dense<0.000000e+00> : vector<4xf32>
    %56 = vector.multi_reduction <add>, %33, %cst_29 [1] : vector<4x256xf32> to vector<4xf32>
    %57 = vector.shape_cast %56 : vector<4xf32> to vector<4x1xf32>
    %cst_30 = arith.constant 2.560000e+02 : f32
    %58 = vector.broadcast %cst_30 : f32 to vector<4x1xf32>
    %59 = arith.divf %57, %58 : vector<4x1xf32>
    %cst_31 = arith.constant dense<0.000000e+00> : vector<4xf32>
    %60 = vector.multi_reduction <add>, %55, %cst_31 [1] : vector<4x256xf32> to vector<4xf32>
    %61 = vector.shape_cast %60 : vector<4xf32> to vector<4x1xf32>
    %cst_32 = arith.constant 2.560000e+02 : f32
    %62 = vector.broadcast %cst_32 : f32 to vector<4x1xf32>
    %63 = arith.divf %61, %62 : vector<4x1xf32>
    %64 = tpu.concatenate %59, %63 in 0 : vector<4x1xf32>, vector<4x1xf32> -> vector<8x1xf32>
    %cst_33 = arith.constant dense<0.000000e+00> : vector<8x1xf32>
    %65 = tpu.matmul %4, %64, %cst_33 {dimension_numbers = #tpu.dot_dimension_numbers<[1], [0], [0], [1], [0, 0, 1, 1], [], []>} : vector<8x8xf32>, vector<8x1xf32>, vector<8x1xf32> -> vector<8x1xf32>
    %66 = vector.extract_strided_slice %65 {offsets = [0, 0], sizes = [4, 1], strides = [1, 1]} : vector<8x1xf32> to vector<4x1xf32>
    %67 = vector.extract_strided_slice %65 {offsets = [4, 0], sizes = [4, 1], strides = [1, 1]} : vector<8x1xf32> to vector<4x1xf32>
    %68 = math.absf %66 : vector<4x1xf32>
    %cst_34 = arith.constant 9.99999996E-13 : f32
    %69 = vector.broadcast %cst_34 : f32 to vector<4x1xf32>
    %70 = arith.maximumf %68, %69 : vector<4x1xf32>
    %71 = arith.divf %66, %70 : vector<4x1xf32>
    %72 = math.absf %67 : vector<4x1xf32>
    %cst_35 = arith.constant 9.99999996E-13 : f32
    %73 = vector.broadcast %cst_35 : f32 to vector<4x1xf32>
    %74 = arith.maximumf %72, %73 : vector<4x1xf32>
    %75 = arith.divf %67, %74 : vector<4x1xf32>
    %76 = tpu.transpose %75, [1, 0] : vector<4x1xf32> -> vector<1x4xf32>
    %77 = vector.broadcast %71 : vector<4x1xf32> to vector<4x4xf32>
    %78 = vector.broadcast %76 : vector<1x4xf32> to vector<4x4xf32>
    %79 = arith.mulf %77, %78 : vector<4x4xf32>
    %80 = vector.broadcast %7 : f32 to vector<4x4xf32>
    %81 = arith.mulf %79, %80 : vector<4x4xf32>
    %cst_36 = arith.constant dense<0xFF800000> : vector<4xf32>
    %82 = vector.multi_reduction <maximumf>, %81, %cst_36 [1] : vector<4x4xf32> to vector<4xf32>
    %83 = vector.shape_cast %82 : vector<4xf32> to vector<4x1xf32>
    %84 = vector.broadcast %83 : vector<4x1xf32> to vector<4x4xf32>
    %85 = arith.subf %81, %84 : vector<4x4xf32>
    %86 = math.exp %85 : vector<4x4xf32>
    %cst_37 = arith.constant dense<0.000000e+00> : vector<4xf32>
    %87 = vector.multi_reduction <add>, %86, %cst_37 [1] : vector<4x4xf32> to vector<4xf32>
    %88 = vector.shape_cast %87 : vector<4xf32> to vector<4x1xf32>
    %89 = vector.broadcast %88 : vector<4x1xf32> to vector<4x4xf32>
    %90 = arith.divf %86, %89 : vector<4x4xf32>
    %cst_38 = arith.constant dense<0.000000e+00> : vector<4x4xf32>
    %91 = tpu.matmul %6, %90, %cst_38 {dimension_numbers = #tpu.dot_dimension_numbers<[1], [0], [0], [1], [0, 0, 1, 1], [], []>} : vector<4x4xf32>, vector<4x4xf32>, vector<4x4xf32> -> vector<4x4xf32>
    %cst_39 = arith.constant dense<0.000000e+00> : vector<4x8xf32>
    %92 = tpu.matmul %91, %5, %cst_39 {dimension_numbers = #tpu.dot_dimension_numbers<[1], [0], [0], [1], [0, 0, 1, 1], [], []>} : vector<4x4xf32>, vector<4x8xf32>, vector<4x8xf32> -> vector<4x8xf32>
    %93 = vector.extract_strided_slice %92 {offsets = [0, 0], sizes = [4, 4], strides = [1, 1]} : vector<4x8xf32> to vector<4x4xf32>
    %cst_40 = arith.constant dense<0.000000e+00> : vector<4x256xf32>
    %94 = tpu.matmul %93, %33, %cst_40 {dimension_numbers = #tpu.dot_dimension_numbers<[1], [0], [0], [1], [0, 0, 1, 1], [], []>} : vector<4x4xf32>, vector<4x256xf32>, vector<4x256xf32> -> vector<4x256xf32>
    %95 = vector.extract_strided_slice %92 {offsets = [0, 4], sizes = [4, 4], strides = [1, 1]} : vector<4x8xf32> to vector<4x4xf32>
    %cst_41 = arith.constant dense<0.000000e+00> : vector<4x256xf32>
    %96 = tpu.matmul %95, %55, %cst_41 {dimension_numbers = #tpu.dot_dimension_numbers<[1], [0], [0], [1], [0, 0, 1, 1], [], []>} : vector<4x4xf32>, vector<4x256xf32>, vector<4x256xf32> -> vector<4x256xf32>
    %97 = arith.addf %94, %96 : vector<4x256xf32>
    %c0_42 = arith.constant 0 : index
    %c0_43 = arith.constant 0 : index
    %c0_44 = arith.constant 0 : index
    %98 = vector.load %arg11[%c0_42, %c0_43, %c0_44] : memref<1x4x256xf32, #tpu.memory_space<vmem>>, vector<1x4x256xf32>
    %99 = vector.shape_cast %98 : vector<1x4x256xf32> to vector<4x256xf32>
    %100 = vector.shape_cast %97 : vector<4x256xf32> to vector<1x4x256xf32>
    tpu.vector_store %arg11[%c0_42, %c0_43, %c0_44], %100 {strides = array<i32>} : memref<1x4x256xf32, #tpu.memory_space<vmem>>, vector<1x4x256xf32>,
    return
  }
  func.func @transform_0(%arg0: i32) -> (i32, i32, i32) {
    %c0_i32 = arith.constant 0 : i32
    %c0_i32_0 = arith.constant 0 : i32
    %c0_i32_1 = arith.constant 0 : i32
    return %arg0, %c0_i32, %c0_i32_0 : i32, i32, i32
  }
  func.func @transform_1(%arg0: i32) -> (i32, i32, i32) {
    %c0_i32 = arith.constant 0 : i32
    %c0_i32_0 = arith.constant 0 : i32
    %c0_i32_1 = arith.constant 0 : i32
    return %arg0, %c0_i32, %c0_i32_0 : i32, i32, i32
  }
  func.func @transform_2(%arg0: i32) -> (i32, i32) {
    %c0_i32 = arith.constant 0 : i32
    %c0_i32_0 = arith.constant 0 : i32
    %c0_i32_1 = arith.constant 0 : i32
    return %c0_i32, %c0_i32_0 : i32, i32
  }
  func.func @transform_3(%arg0: i32) -> (i32, i32) {
    %c0_i32 = arith.constant 0 : i32
    %c0_i32_0 = arith.constant 0 : i32
    %c0_i32_1 = arith.constant 0 : i32
    return %c0_i32, %c0_i32_0 : i32, i32
  }
  func.func @transform_4(%arg0: i32) -> (i32, i32) {
    %c0_i32 = arith.constant 0 : i32
    %c0_i32_0 = arith.constant 0 : i32
    %c0_i32_1 = arith.constant 0 : i32
    return %c0_i32, %c0_i32_0 : i32, i32
  }
  func.func @transform_5(%arg0: i32) -> (i32, i32) {
    %c0_i32 = arith.constant 0 : i32
    %c0_i32_0 = arith.constant 0 : i32
    %c0_i32_1 = arith.constant 0 : i32
    return %c0_i32, %c0_i32_0 : i32, i32
  }
  func.func @transform_6(%arg0: i32) -> (i32, i32) {
    %c0_i32 = arith.constant 0 : i32
    %c0_i32_0 = arith.constant 0 : i32
    %c0_i32_1 = arith.constant 0 : i32
    return %c0_i32, %c0_i32_0 : i32, i32
  }
  func.func @transform_7(%arg0: i32) -> (i32, i32) {
    %c0_i32 = arith.constant 0 : i32
    %c0_i32_0 = arith.constant 0 : i32
    %c0_i32_1 = arith.constant 0 : i32
    return %c0_i32, %c0_i32_0 : i32, i32
  }
  func.func @transform_8(%arg0: i32) -> (i32, i32) {
    %c0_i32 = arith.constant 0 : i32
    %c0_i32_0 = arith.constant 0 : i32
    %c0_i32_1 = arith.constant 0 : i32
    return %c0_i32, %c0_i32_0 : i32, i32
  }
  func.func @transform_9(%arg0: i32) -> i32 {
    %c0_i32 = arith.constant 0 : i32
    %c0_i32_0 = arith.constant 0 : i32
    return %c0_i32 : i32
  }
  func.func @transform_10(%arg0: i32) -> (i32, i32, i32) {
    %c0_i32 = arith.constant 0 : i32
    %c0_i32_0 = arith.constant 0 : i32
    %c0_i32_1 = arith.constant 0 : i32
    return %arg0, %c0_i32, %c0_i32_0 : i32, i32, i32
  }
}

</mosaic_0001>

<llo_original>
// kernel: tpu_custom_call.1
$region0: #{tpu_custom_call.1}
  #allocation0 [shape = 'u32[]', space=smem, size = 0x4, offset = 0x4, fixed_abs, tag = 'smem constant byte address 0x4 - core index']
  #allocation1 [shape = 'u32[144,128]{1,0:T(1,128)}', space=vmem, size = 0x12000, scoped, tag = 'internal scratch']
  #allocation2 [shape = 'f32[1]{0:T(128)S(6)}', space=smem, size = 0x200, scoped, tag = 'scoped memory for tpu_custom_call.1']
  %s0 = inlined_call_operand.vmem [shape: f32[2,4,256], index: 0, kind: input, shape index: {}]
  %s1 = inlined_call_operand.hbm [shape: f32[2,4,256], index: 1, kind: input, shape index: {}]
  %s2 = inlined_call_operand.vmem [shape: f32[4,1], index: 2, kind: input, shape index: {}]
  %s3 = inlined_call_operand.vmem [shape: f32[4,1], index: 3, kind: input, shape index: {}]
  %s4 = inlined_call_operand.vmem [shape: f32[4,1], index: 4, kind: input, shape index: {}]
  %s5 = inlined_call_operand.vmem [shape: f32[4,1], index: 5, kind: input, shape index: {}]
  %s6 = inlined_call_operand.vmem [shape: f32[8,8], index: 6, kind: input, shape index: {}]
  %s7 = inlined_call_operand.vmem [shape: f32[4,8], index: 7, kind: input, shape index: {}]
  %s8 = inlined_call_operand.vmem [shape: f32[4,4], index: 8, kind: input, shape index: {}]
  %s9 = inlined_call_operand.<no memory space> [shape: f32[1], index: 9, kind: input, shape index: {}]
  %s10 = inlined_call_operand.hbm [shape: f32[2,4,256], index: 10, kind: output, shape index: {}]
  %s11 = sld [smem:[#allocation0]]
  $region77: #{tpu_custom_call.1} parent=0
    _
  %s13 = ssub.s32 1, %s11
  %s14 = scalar_select 0, %s13, %s11
  %15 = sst [smem:[#allocation2]] %s9
  $region1: #{tpu_custom_call.1} parent=0
    #allocation3 [shape = 'u8[8192]{0}', space=vmem, size = 0x2000, scoped, tag = 'input window, operand 1']
    #allocation4 [shape = 's32[2]{0}', space=sflag, size = 0x8, scoped, tag = 'scoped memory for tpu_custom_call.1']
    #allocation5 [shape = 's32[2]{0}', space=sflag, size = 0x8, scoped, tag = 'scoped memory for tpu_custom_call.1']
    #allocation6 [shape = 'u8[8192]{0}', space=vmem, size = 0x2000, scoped, tag = 'output window, operand 0']
    %16 = vsyncpa [#allocation4], 0
    %s17 = scalar_lea.sflag [#allocation4], 1
    %18 = vsyncpa %s17, 0
    %19 = vsyncpa [#allocation5], 0
    %s20 = scalar_lea.sflag [#allocation5], 1
    %21 = vsyncpa %s20, 0
    loop: start=0, step=1, limit=4
    $region2: #{tpu_custom_call.1} parent=1 // loop_pre_header
      _
    $region3: #{tpu_custom_call.1} parent=1 // loop_header
      %s23 = sphi 0, %s27
      %p24 = scmp.ge.s32.totalorder %s23, 4
      %s33 = sphi 0, %s35
      %s36 = sphi 0, %s33
      %s37 = sphi 0, %s36
      %s53 = sphi 0, %s37
      %s59 = sphi 0, %s61
      %s62 = sphi 0, %s59
      %s63 = sphi 0, %s62
      %s79 = sphi 0, %s63
      %s83 = sphi 0, %s83
      %s85 = sphi 0, %s83
      %s86 = sphi 0, %s85
      %s100 = sphi 0, %s86
      %s104 = sphi 0, %s104
      %s106 = sphi 0, %s104
      %s107 = sphi 0, %s106
      %s121 = sphi 0, %s107
      %s125 = sphi 0, %s125
      %s127 = sphi 0, %s125
      %s128 = sphi 0, %s127
      %s142 = sphi 0, %s128
      %s146 = sphi 0, %s146
      %s148 = sphi 0, %s146
      %s149 = sphi 0, %s148
      %s163 = sphi 0, %s149
      %s167 = sphi 0, %s167
      %s169 = sphi 0, %s167
      %s170 = sphi 0, %s169
      %s184 = sphi 0, %s170
      %s188 = sphi 0, %s188
      %s190 = sphi 0, %s188
      %s191 = sphi 0, %s190
      %s205 = sphi 0, %s191
      %s209 = sphi 0, %s209
      %s211 = sphi 0, %s209
      %s212 = sphi 0, %s211
      %s226 = sphi 0, %s212
      %s230 = sphi 0, %s230
      %s232 = sphi 0, %s230
      %s233 = sphi 0, %s232
      %s247 = sphi 0, %s233
      %s253 = sphi 0, %s255
      %s256 = sphi 0, %s253
      %s257 = sphi 0, %s256
      %s273 = sphi 0, %s257
    $region4: #{tpu_custom_call.1} parent=1 // loop_header_branch
      %26 = sbr.rel (%p24) target = $region8
    $region5: #{tpu_custom_call.1} parent=1 // loop_body
      %s28 = ssub.s32 %s23, 1
      %s29 = ssub.s32 %s23, 2
      %s30 = sadd.s32 %s23, 1
      %s31 = ssub.s32 %s23, %s30
      %p32 = scmp.eq.s32.totalorder %s31, 0
      %s34 = sadd.s32 %s33, 1
      %s35 = scalar_select %p32, %s33, %s34
      %p38 = pneg %p32
      %p39 = scmp.eq.s32.totalorder %s23, 1
      %p40 = por %p38, %p39
      %p41 = scmp.ne.s32.totalorder %s33, %s36
      %p42 = scmp.eq.s32.totalorder %s23, 0
      %p43 = por %p41, %p42
      %p44 = scmp.ne.s32.totalorder %s33, %s36
      %p45 = scmp.eq.s32.totalorder %s28, 1
      %p46 = por %p44, %p45
      %p47 = scmp.ne.s32.totalorder %s36, %s37
      %p48 = scmp.eq.s32.totalorder %s28, 0
      %p49 = por %p47, %p48
      %p50 = scmp.ne.s32.totalorder %s36, %s37
      %p51 = scmp.eq.s32.totalorder %s29, 1
      %p52 = por %p50, %p51
      %p54 = scmp.ne.s32.totalorder %s37, %s53
      %p55 = scmp.eq.s32.totalorder %s29, 0
      %p56 = por %p54, %p55
      %s57 = ssub.s32 %s23, %s30
      %p58 = scmp.eq.s32.totalorder %s57, 0
      %s60 = sadd.s32 %s59, 1
      %s61 = scalar_select %p58, %s59, %s60
      %p64 = pneg %p58
      %p65 = scmp.eq.s32.totalorder %s23, 1
      %p66 = por %p64, %p65
      %p67 = scmp.ne.s32.totalorder %s59, %s62
      %p68 = scmp.eq.s32.totalorder %s23, 0
      %p69 = por %p67, %p68
      %p70 = scmp.ne.s32.totalorder %s59, %s62
      %p71 = scmp.eq.s32.totalorder %s28, 1
      %p72 = por %p70, %p71
      %p73 = scmp.ne.s32.totalorder %s62, %s63
      %p74 = scmp.eq.s32.totalorder %s28, 0
      %p75 = por %p73, %p74
      %p76 = scmp.ne.s32.totalorder %s62, %s63
      %p77 = scmp.eq.s32.totalorder %s29, 1
      %p78 = por %p76, %p77
      %p80 = scmp.ne.s32.totalorder %s63, %s79
      %p81 = scmp.eq.s32.totalorder %s29, 0
      %p82 = por %p80, %p81
      %s84 = sadd.s32 %s83, 1
      %p87 = scmp.eq.s32.totalorder %s23, 1
      %p88 = scmp.ne.s32.totalorder %s83, %s85
      %p89 = scmp.eq.s32.totalorder %s23, 0
      %p90 = por %p88, %p89
      %p91 = scmp.ne.s32.totalorder %s83, %s85
      %p92 = scmp.eq.s32.totalorder %s28, 1
      %p93 = por %p91, %p92
      %p94 = scmp.ne.s32.totalorder %s85, %s86
      %p95 = scmp.eq.s32.totalorder %s28, 0
      %p96 = por %p94, %p95
      %p97 = scmp.ne.s32.totalorder %s85, %s86
      %p98 = scmp.eq.s32.totalorder %s29, 1
      %p99 = por %p97, %p98
      %p101 = scmp.ne.s32.totalorder %s86, %s100
      %p102 = scmp.eq.s32.totalorder %s29, 0
      %p103 = por %p101, %p102
      %s105 = sadd.s32 %s104, 1
      %p108 = scmp.eq.s32.totalorder %s23, 1
      %p109 = scmp.ne.s32.totalorder %s104, %s106
      %p110 = scmp.eq.s32.totalorder %s23, 0
      %p111 = por %p109, %p110
      %p112 = scmp.ne.s32.totalorder %s104, %s106
      %p113 = scmp.eq.s32.totalorder %s28, 1
      %p114 = por %p112, %p113
      %p115 = scmp.ne.s32.totalorder %s106, %s107
      %p116 = scmp.eq.s32.totalorder %s28, 0
      %p117 = por %p115, %p116
      %p118 = scmp.ne.s32.totalorder %s106, %s107
      %p119 = scmp.eq.s32.totalorder %s29, 1
      %p120 = por %p118, %p119
      %p122 = scmp.ne.s32.totalorder %s107, %s121
      %p123 = scmp.eq.s32.totalorder %s29, 0
      %p124 = por %p122, %p123
      %s126 = sadd.s32 %s125, 1
      %p129 = scmp.eq.s32.totalorder %s23, 1
      %p130 = scmp.ne.s32.totalorder %s125, %s127
      %p131 = scmp.eq.s32.totalorder %s23, 0
      %p132 = por %p130, %p131
      %p133 = scmp.ne.s32.totalorder %s125, %s127
      %p134 = scmp.eq.s32.totalorder %s28, 1
      %p135 = por %p133, %p134
      %p136 = scmp.ne.s32.totalorder %s127, %s128
      %p137 = scmp.eq.s32.totalorder %s28, 0
      %p138 = por %p136, %p137
      %p139 = scmp.ne.s32.totalorder %s127, %s128
      %p140 = scmp.eq.s32.totalorder %s29, 1
      %p141 = por %p139, %p140
      %p143 = scmp.ne.s32.totalorder %s128, %s142
      %p144 = scmp.eq.s32.totalorder %s29, 0
      %p145 = por %p143, %p144
      %s147 = sadd.s32 %s146, 1
      %p150 = scmp.eq.s32.totalorder %s23, 1
      %p151 = scmp.ne.s32.totalorder %s146, %s148
      %p152 = scmp.eq.s32.totalorder %s23, 0
      %p153 = por %p151, %p152
      %p154 = scmp.ne.s32.totalorder %s146, %s148
      %p155 = scmp.eq.s32.totalorder %s28, 1
      %p156 = por %p154, %p155
      %p157 = scmp.ne.s32.totalorder %s148, %s149
      %p158 = scmp.eq.s32.totalorder %s28, 0
      %p159 = por %p157, %p158
      %p160 = scmp.ne.s32.totalorder %s148, %s149
      %p161 = scmp.eq.s32.totalorder %s29, 1
      %p162 = por %p160, %p161
      %p164 = scmp.ne.s32.totalorder %s149, %s163
      %p165 = scmp.eq.s32.totalorder %s29, 0
      %p166 = por %p164, %p165
      %s168 = sadd.s32 %s167, 1
      %p171 = scmp.eq.s32.totalorder %s23, 1
      %p172 = scmp.ne.s32.totalorder %s167, %s169
      %p173 = scmp.eq.s32.totalorder %s23, 0
      %p174 = por %p172, %p173
      %p175 = scmp.ne.s32.totalorder %s167, %s169
      %p176 = scmp.eq.s32.totalorder %s28, 1
      %p177 = por %p175, %p176
      %p178 = scmp.ne.s32.totalorder %s169, %s170
      %p179 = scmp.eq.s32.totalorder %s28, 0
      %p180 = por %p178, %p179
      %p181 = scmp.ne.s32.totalorder %s169, %s170
      %p182 = scmp.eq.s32.totalorder %s29, 1
      %p183 = por %p181, %p182
      %p185 = scmp.ne.s32.totalorder %s170, %s184
      %p186 = scmp.eq.s32.totalorder %s29, 0
      %p187 = por %p185, %p186
      %s189 = sadd.s32 %s188, 1
      %p192 = scmp.eq.s32.totalorder %s23, 1
      %p193 = scmp.ne.s32.totalorder %s188, %s190
      %p194 = scmp.eq.s32.totalorder %s23, 0
      %p195 = por %p193, %p194
      %p196 = scmp.ne.s32.totalorder %s188, %s190
      %p197 = scmp.eq.s32.totalorder %s28, 1
      %p198 = por %p196, %p197
      %p199 = scmp.ne.s32.totalorder %s190, %s191
      %p200 = scmp.eq.s32.totalorder %s28, 0
      %p201 = por %p199, %p200
      %p202 = scmp.ne.s32.totalorder %s190, %s191
      %p203 = scmp.eq.s32.totalorder %s29, 1
      %p204 = por %p202, %p203
      %p206 = scmp.ne.s32.totalorder %s191, %s205
      %p207 = scmp.eq.s32.totalorder %s29, 0
      %p208 = por %p206, %p207
      %s210 = sadd.s32 %s209, 1
      %p213 = scmp.eq.s32.totalorder %s23, 1
      %p214 = scmp.ne.s32.totalorder %s209, %s211
      %p215 = scmp.eq.s32.totalorder %s23, 0
      %p216 = por %p214, %p215
      %p217 = scmp.ne.s32.totalorder %s209, %s211
      %p218 = scmp.eq.s32.totalorder %s28, 1
      %p219 = por %p217, %p218
      %p220 = scmp.ne.s32.totalorder %s211, %s212
      %p221 = scmp.eq.s32.totalorder %s28, 0
      %p222 = por %p220, %p221
      %p223 = scmp.ne.s32.totalorder %s211, %s212
      %p224 = scmp.eq.s32.totalorder %s29, 1
      %p225 = por %p223, %p224
      %p227 = scmp.ne.s32.totalorder %s212, %s226
      %p228 = scmp.eq.s32.totalorder %s29, 0
      %p229 = por %p227, %p228
      %s231 = sadd.s32 %s230, 1
      %p234 = scmp.eq.s32.totalorder %s23, 1
      %p235 = scmp.ne.s32.totalorder %s230, %s232
      %p236 = scmp.eq.s32.totalorder %s23, 0
      %p237 = por %p235, %p236
      %p238 = scmp.ne.s32.totalorder %s230, %s232
      %p239 = scmp.eq.s32.totalorder %s28, 1
      %p240 = por %p238, %p239
      %p241 = scmp.ne.s32.totalorder %s232, %s233
      %p242 = scmp.eq.s32.totalorder %s28, 0
      %p243 = por %p241, %p242
      %p244 = scmp.ne.s32.totalorder %s232, %s233
      %p245 = scmp.eq.s32.totalorder %s29, 1
      %p246 = por %p244, %p245
      %p248 = scmp.ne.s32.totalorder %s233, %s247
      %p249 = scmp.eq.s32.totalorder %s29, 0
      %p250 = por %p248, %p249
      %s251 = ssub.s32 %s23, %s30
      %p252 = scmp.eq.s32.totalorder %s251, 0
      %s254 = sadd.s32 %s253, 1
      %s255 = scalar_select %p252, %s253, %s254
      %p258 = pneg %p252
      %p259 = scmp.eq.s32.totalorder %s23, 1
      %p260 = por %p258, %p259
      %p261 = scmp.ne.s32.totalorder %s253, %s256
      %p262 = scmp.eq.s32.totalorder %s23, 0
      %p263 = por %p261, %p262
      %p264 = scmp.ne.s32.totalorder %s253, %s256
      %p265 = scmp.eq.s32.totalorder %s28, 1
      %p266 = por %p264, %p265
      %p267 = scmp.ne.s32.totalorder %s256, %s257
      %p268 = scmp.eq.s32.totalorder %s28, 0
      %p269 = por %p267, %p268
      %p270 = scmp.ne.s32.totalorder %s256, %s257
      %p271 = scmp.eq.s32.totalorder %s29, 1
      %p272 = por %p270, %p271
      %p274 = scmp.ne.s32.totalorder %s257, %s273
      %p275 = scmp.eq.s32.totalorder %s29, 0
      %p276 = por %p274, %p275
      %p277 = scmp.le.s32.totalorder 1, %s23
      %p278 = scmp.lt.s32.totalorder %s23, 3
      %p279 = pnand %p277, %p278
      %p280 = pneg %p279
      // Predicated region
      $region9: #{tpu_custom_call.1} parent=5 // pred_check
        _
      $region10: #{tpu_custom_call.1} parent=5 // pred_check_branch
        %282 = sbr.rel (%p279) target = $region12
      $region11: #{tpu_custom_call.1} parent=5 // pred_region
        %s283 = ssub.s32 %s23, 1
        // Predicated region
        $region13: #{tpu_custom_call.1} parent=11 // pred_check
          %p284 = pneg %p96
        $region14: #{tpu_custom_call.1} parent=11 // pred_check_branch
          %286 = sbr.rel (%p284) target = $region16
        $region15: #{tpu_custom_call.1} parent=11 // pred_region
          _
        $region16: #{tpu_custom_call.1} parent=11 // pred_fallthru
          _
        // Predicated region
        $region17: #{tpu_custom_call.1} parent=11 // pred_check
          %p287 = pneg %p117
        $region18: #{tpu_custom_call.1} parent=11 // pred_check_branch
          %289 = sbr.rel (%p287) target = $region20
        $region19: #{tpu_custom_call.1} parent=11 // pred_region
          _
        $region20: #{tpu_custom_call.1} parent=11 // pred_fallthru
          _
        // Predicated region
        $region21: #{tpu_custom_call.1} parent=11 // pred_check
          %p290 = pneg %p138
        $region22: #{tpu_custom_call.1} parent=11 // pred_check_branch
          %292 = sbr.rel (%p290) target = $region24
        $region23: #{tpu_custom_call.1} parent=11 // pred_region
          _
        $region24: #{tpu_custom_call.1} parent=11 // pred_fallthru
          _
        // Predicated region
        $region25: #{tpu_custom_call.1} parent=11 // pred_check
          %p293 = pneg %p159
        $region26: #{tpu_custom_call.1} parent=11 // pred_check_branch
          %295 = sbr.rel (%p293) target = $region28
        $region27: #{tpu_custom_call.1} parent=11 // pred_region
          _
        $region28: #{tpu_custom_call.1} parent=11 // pred_fallthru
          _
        // Predicated region
        $region29: #{tpu_custom_call.1} parent=11 // pred_check
          %p296 = pneg %p180
        $region30: #{tpu_custom_call.1} parent=11 // pred_check_branch
          %298 = sbr.rel (%p296) target = $region32
        $region31: #{tpu_custom_call.1} parent=11 // pred_region
          _
        $region32: #{tpu_custom_call.1} parent=11 // pred_fallthru
          _
        // Predicated region
        $region33: #{tpu_custom_call.1} parent=11 // pred_check
          %p299 = pneg %p201
        $region34: #{tpu_custom_call.1} parent=11 // pred_check_branch
          %301 = sbr.rel (%p299) target = $region36
        $region35: #{tpu_custom_call.1} parent=11 // pred_region
          _
        $region36: #{tpu_custom_call.1} parent=11 // pred_fallthru
          _
        // Predicated region
        $region37: #{tpu_custom_call.1} parent=11 // pred_check
          %p302 = pneg %p222
        $region38: #{tpu_custom_call.1} parent=11 // pred_check_branch
          %304 = sbr.rel (%p302) target = $region40
        $region39: #{tpu_custom_call.1} parent=11 // pred_region
          _
        $region40: #{tpu_custom_call.1} parent=11 // pred_fallthru
          _
        // Predicated region
        $region41: #{tpu_custom_call.1} parent=11 // pred_check
          %p305 = pneg %p243
        $region42: #{tpu_custom_call.1} parent=11 // pred_check_branch
          %307 = sbr.rel (%p305) target = $region44
        $region43: #{tpu_custom_call.1} parent=11 // pred_region
          _
        $region44: #{tpu_custom_call.1} parent=11 // pred_fallthru
          _
      $region12: #{tpu_custom_call.1} parent=5 // pred_fallthru
        _
      %p308 = scmp.lt.s32.totalorder %s23, 2
      // Predicated region
      $region45: #{tpu_custom_call.1} parent=5 // pred_check
        %p309 = pneg %p308
      $region46: #{tpu_custom_call.1} parent=5 // pred_check_branch
        %311 = sbr.rel (%p309) target = $region48
      $region47: #{tpu_custom_call.1} parent=5 // pred_region
        // Predicated region
        $region49: #{tpu_custom_call.1} parent=47 // pred_check
          %p312 = pneg %p43
        $region50: #{tpu_custom_call.1} parent=47 // pred_check_branch
          %314 = sbr.rel (%p312) target = $region52
        $region51: #{tpu_custom_call.1} parent=47 // pred_region
          %p315 = scmp.lt.s32.totalorder %s23, 1
          %s316 = scalar_select %p315, %s23, 1
          %s317 = smul.addr %s316, 2
          %s318 = smul.addr %s317, 4
          %s319 = scalar_lea.vmem %s0, %s318
        $region52: #{tpu_custom_call.1} parent=47 // pred_fallthru
          _
        // Predicated region
        $region53: #{tpu_custom_call.1} parent=47 // pred_check
          %p320 = pneg %p69
        $region54: #{tpu_custom_call.1} parent=47 // pred_check_branch
          %322 = sbr.rel (%p320) target = $region56
        $region55: #{tpu_custom_call.1} parent=47 // pred_region
          %s323 = sand.u32 %s59, 1
          %s324 = scalar_lea.sflag [#allocation4], %s323
          %s325 = sand.u32 %s59, 1
          %s326 = smul.addr %s325, 8
          %s327 = scalar_lea.vmem [#allocation3], %s326
          %s329 = ssub.s32 128, 128
          %330 = vsyncadd %s324, %s329
          %s331 = smul.addr %s23, 2
          %s332 = smul.addr %s331, 64
          %s333 = scalar_lea.hbm %s1, %s332
          %s335 = sshll.u32 %s327, 4
          %s336 = int_to_ptr.vmem [resolvable:$true] %s335
          %338 = dma.hbm_to_vmem [thread:$0]  %s333, 128, %s336, %s324
        $region56: #{tpu_custom_call.1} parent=47 // pred_fallthru
          _
      $region48: #{tpu_custom_call.1} parent=5 // pred_fallthru
        _
      %p339 = scmp.le.s32.totalorder 1, %s23
      %p340 = scmp.lt.s32.totalorder %s23, 3
      %p341 = pnand %p339, %p340
      %p342 = pneg %p341
      // Predicated region
      $region57: #{tpu_custom_call.1} parent=5 // pred_check
        _
      $region58: #{tpu_custom_call.1} parent=5 // pred_check_branch
        %344 = sbr.rel (%p341) target = $region60
      $region59: #{tpu_custom_call.1} parent=5 // pred_region
        %s345 = ssub.s32 %s23, 1
        %s346 = sand.u32 %s62, 1
        %s347 = scalar_lea.sflag [#allocation4], %s346
        %s348 = sand.u32 %s62, 1
        %s349 = smul.addr %s348, 8
        %s350 = scalar_lea.vmem [#allocation3], %s349
        // Predicated region
        $region61: #{tpu_custom_call.1} parent=59 // pred_check
          %p351 = pneg %p75
        $region62: #{tpu_custom_call.1} parent=59 // pred_check_branch
          %353 = sbr.rel (%p351) target = $region64
        $region63: #{tpu_custom_call.1} parent=59 // pred_region
          %354 = dma.done %s347, 128
        $region64: #{tpu_custom_call.1} parent=59 // pred_fallthru
          _
        %p355 = scmp.lt.s32.totalorder %s28, 1
        %s356 = scalar_select %p355, %s28, 1
        %s357 = smul.addr %s356, 2
        %s358 = smul.addr %s357, 4
        %s359 = scalar_lea.vmem %s0, %s358
        %p360 = pneg %p49
        %p361 = pneg %p46
        %s362 = sand.u32 %s62, 1
        %s363 = scalar_lea.sflag [#allocation4], %s362
        %s364 = sand.u32 %s62, 1
        %s365 = smul.addr %s364, 8
        %s366 = scalar_lea.vmem [#allocation3], %s365
        %p367 = pneg %p75
        %p368 = pneg %p72
        %p369 = pneg %p96
        %p370 = pneg %p93
        %p371 = pneg %p117
        %p372 = pneg %p114
        %p373 = pneg %p138
        %p374 = pneg %p135
        %p375 = pneg %p159
        %p376 = pneg %p156
        %p377 = pneg %p180
        %p378 = pneg %p177
        %p379 = pneg %p201
        %p380 = pneg %p198
        %p381 = pneg %p222
        %p382 = pneg %p219
        %p383 = pneg %p243
        %p384 = pneg %p240
        %p385 = pneg %p269
        %p386 = pneg %p266
        %s387 = sand.u32 %s256, 1
        %s388 = scalar_lea.sflag [#allocation5], %s387
        %s389 = sand.u32 %s256, 1
        %s390 = smul.addr %s389, 8
        %s391 = scalar_lea.vmem [#allocation6], %s390
        %p392 = scmp.lt.s32.totalorder %s28, 1
        %s393 = scalar_select %p392, %s28, 1
        %s394 = smul.addr %s393, 2
        %s395 = smul.addr %s394, 4
        %s396 = scalar_lea.vmem %s0, %s395
        %v397 = vld [vmem:[%s2] sm:$0xf]
        %v398 = vld [vmem:[%s3] sm:$0xf]
        %v399 = vld [vmem:[%s4] sm:$0xf]
        %v400 = vld [vmem:[%s5] sm:$0xf]
        %v401 = vld [vmem:[%s6] sm:$0xff]
        %v402 = vld [vmem:[%s7] sm:$0xf]
        %v403 = vld [vmem:[%s8] sm:$0xf]
        %s404 = sld [smem:[#allocation2]]
        %v405 = vld [vmem:[%s396] sm:$0xff]
        %v406 = vld [vmem:[%s350] sm:$0xff]
        %v408 = vcombine.high %v405, %v405
        %vm410 = vcmask 1043456
        %v411 = vsel %vm410, %v405, 0.0
        %v412 = vrot.slane %v411, 4
        %v413 = vadd.f32 %v411, %v412
        %v414 = vrot.slane %v413, 2
        %v415 = vadd.f32 %v413, %v414
        %v416 = vrot.slane %v415, 1
        %v417 = vadd.f32 %v415, %v416
        %v418 = vsel %vm410, %v408, 0.0
        %v419 = vrot.slane %v418, 4
        %v420 = vadd.f32 %v418, %v419
        %v421 = vrot.slane %v420, 2
        %v422 = vadd.f32 %v420, %v421
        %v423 = vrot.slane %v422, 1
        %v424 = vadd.f32 %v422, %v423
        %v425 = vrcp.pop 4.0
        %v426 = vmul.f32 %v417, %v425
        %v427 = vmul.f32 %v424, %v425
        %v430 = vcombine.low %v426, %v427
        %v432 = vsub.f32 %v405, %v430
        %v433 = vmul.f32 %v432, %v432
        %v435 = vcombine.high %v433, %v433
        %v437 = vsel %vm410, %v433, 0.0
        %v438 = vrot.slane %v437, 4
        %v439 = vadd.f32 %v437, %v438
        %v440 = vrot.slane %v439, 2
        %v441 = vadd.f32 %v439, %v440
        %v442 = vrot.slane %v441, 1
        %v443 = vadd.f32 %v441, %v442
        %v444 = vsel %vm410, %v435, 0.0
        %v445 = vrot.slane %v444, 4
        %v446 = vadd.f32 %v444, %v445
        %v447 = vrot.slane %v446, 2
        %v448 = vadd.f32 %v446, %v447
        %v449 = vrot.slane %v448, 1
        %v450 = vadd.f32 %v448, %v449
        %v451 = vmul.f32 %v443, %v425
        %v452 = vmul.f32 %v450, %v425
        %v453 = vadd.f32 %v451, 1e-06
        %v454 = vadd.f32 %v452, 1e-06
        %v455 = vrsqrt.pop %v453
        %v456 = vrsqrt.pop %v454
        %v459 = vcombine.low %v455, %v456
        %v461 = vmul.f32 %v432, %v459
        %463 = vset.pattern.permute.xlu0 0
        %464 = vperm.xlu0 %463, %v397
        %v465 = vpop.permute.xlu0 %464
        %v468 = vcombine.high %v461, %v461
        %v470 = vmul.f32 %v465, %v461
        %v471 = vmul.f32 %v465, %v468
        %473 = vset.pattern.permute.xlu0 0
        %474 = vperm.xlu0 %473, %v398
        %v475 = vpop.permute.xlu0 %474
        %v477 = vadd.f32 %v470, %v475
        %v478 = vadd.f32 %v471, %v475
        %v480 = vcombine.high %v406, %v406
        %v482 = vsel %vm410, %v406, 0.0
        %v483 = vrot.slane %v482, 4
        %v484 = vadd.f32 %v482, %v483
        %v485 = vrot.slane %v484, 2
        %v486 = vadd.f32 %v484, %v485
        %v487 = vrot.slane %v486, 1
        %v488 = vadd.f32 %v486, %v487
        %v489 = vsel %vm410, %v480, 0.0
        %v490 = vrot.slane %v489, 4
        %v491 = vadd.f32 %v489, %v490
        %v492 = vrot.slane %v491, 2
        %v493 = vadd.f32 %v491, %v492
        %v494 = vrot.slane %v493, 1
        %v495 = vadd.f32 %v493, %v494
        %v496 = vmul.f32 %v488, %v425
        %v497 = vmul.f32 %v495, %v425
        %v500 = vcombine.low %v496, %v497
        %v502 = vsub.f32 %v406, %v500
        %v503 = vmul.f32 %v502, %v502
        %v505 = vcombine.high %v503, %v503
        %v507 = vsel %vm410, %v503, 0.0
        %v508 = vrot.slane %v507, 4
        %v509 = vadd.f32 %v507, %v508
        %v510 = vrot.slane %v509, 2
        %v511 = vadd.f32 %v509, %v510
        %v512 = vrot.slane %v511, 1
        %v513 = vadd.f32 %v511, %v512
        %v514 = vsel %vm410, %v505, 0.0
        %v515 = vrot.slane %v514, 4
        %v516 = vadd.f32 %v514, %v515
        %v517 = vrot.slane %v516, 2
        %v518 = vadd.f32 %v516, %v517
        %v519 = vrot.slane %v518, 1
        %v520 = vadd.f32 %v518, %v519
        %v521 = vmul.f32 %v513, %v425
        %v522 = vmul.f32 %v520, %v425
        %v523 = vadd.f32 %v521, 1e-06
        %v524 = vadd.f32 %v522, 1e-06
        %v525 = vrsqrt.pop %v523
        %v526 = vrsqrt.pop %v524
        %v529 = vcombine.low %v525, %v526
        %v531 = vmul.f32 %v502, %v529
        %533 = vset.pattern.permute.xlu0 0
        %534 = vperm.xlu0 %533, %v399
        %v535 = vpop.permute.xlu0 %534
        %v538 = vcombine.high %v531, %v531
        %v540 = vmul.f32 %v535, %v531
        %v541 = vmul.f32 %v535, %v538
        %543 = vset.pattern.permute.xlu0 0
        %544 = vperm.xlu0 %543, %v400
        %v545 = vpop.permute.xlu0 %544
        %v547 = vadd.f32 %v540, %v545
        %v548 = vadd.f32 %v541, %v545
        %v549 = vsel %vm410, %v477, 0.0
        %v550 = vsel %vm410, %v478, 0.0
        %v551 = vadd.f32 %v549, %v550
        %552 = vadd.xlane.f32.xlu0 %v551
        %v553 = vpop.xlane.xlu0 %552
        %v554 = vrcp.pop 256.0
        %v555 = vmul.f32 %v553, %v554
        %v556 = vsel %vm410, %v547, 0.0
        %v557 = vsel %vm410, %v548, 0.0
        %v558 = vadd.f32 %v556, %v557
        %559 = vadd.xlane.f32.xlu0 %v558
        %v560 = vpop.xlane.xlu0 %559
        %v561 = vmul.f32 %v560, %v554
        %v563 = vrot.slane %v561, 4
        %v565 = vsel %vm410, %v555, %v563
        %vm566 = vcmask 64512
        %v568 = vsel %vm566, %v401, 0
        %570 = vmatprep.subr.mxu0 0.0
        %571 = vmatpush1.msra.mxu0 %v565
        %572 = vmatprep.subr.mxu0 0.0
        %573 = vmatpush1.msra.mxu0 0.0
        %574 = vmatprep.subr.mxu0 0.0
        %575 = vmatpush1.msra.mxu0 0.0
        %576 = vmatprep.subr.mxu0 0.0
        %577 = vmatpush1.msra.mxu0 0.0
        %578 = vmatprep.subr.mxu0 0.0
        %579 = vmatpush1.msra.mxu0 0.0
        %580 = vmatprep.subr.mxu0 0.0
        %581 = vmatpush1.msra.mxu0 0.0
        %582 = vmatprep.subr.mxu0 0.0
        %583 = vmatpush1.msra.mxu0 0.0
        %584 = vmatprep.subr.mxu0 0.0
        %585 = vmatpush1.msra.mxu0 0.0
        %586 = vmatprep.subr.mxu0 0.0
        %587 = vmatpush1.msra.mxu0 0.0
        %588 = vmatprep.subr.mxu0 0.0
        %589 = vmatpush1.msra.mxu0 0.0
        %590 = vmatprep.subr.mxu0 0.0
        %591 = vmatpush1.msra.mxu0 0.0
        %592 = vmatprep.subr.mxu0 0.0
        %593 = vmatpush1.msra.mxu0 0.0
        %594 = vmatprep.subr.mxu0 0.0
        %595 = vmatpush1.msra.mxu0 0.0
        %596 = vmatprep.subr.mxu0 0.0
        %597 = vmatpush1.msra.mxu0 0.0
        %598 = vmatprep.subr.mxu0 0.0
        %599 = vmatpush1.msra.mxu0 0.0
        %600 = vmatprep.subr.mxu0 0.0
        %601 = vmatpush1.msra.mxu0 0.0
        %602 = vmatprep.subr.mxu0 0.0
        %603 = vmatpush1.msra.mxu0 0.0
        %604 = vmatprep.subr.mxu0 0.0
        %605 = vmatpush1.msra.mxu0 0.0
        %606 = vmatprep.subr.mxu0 0.0
        %607 = vmatpush1.msra.mxu0 0.0
        %608 = vmatprep.subr.mxu0 0.0
        %609 = vmatpush1.msra.mxu0 0.0
        %610 = vmatprep.subr.mxu0 0.0
        %611 = vmatpush1.msra.mxu0 0.0
        %612 = vmatprep.subr.mxu0 0.0
        %613 = vmatpush1.msra.mxu0 0.0
        %614 = vmatprep.subr.mxu0 0.0
        %615 = vmatpush1.msra.mxu0 0.0
        %616 = vmatprep.subr.mxu0 0.0
        %617 = vmatpush1.msra.mxu0 0.0
        %618 = vmatprep.subr.mxu0 0.0
        %619 = vmatpush1.msra.mxu0 0.0
        %620 = vmatprep.subr.mxu0 0.0
        %621 = vmatpush1.msra.mxu0 0.0
        %622 = vmatprep.subr.mxu0 0.0
        %623 = vmatpush1.msra.mxu0 0.0
        %624 = vmatprep.subr.mxu0 0.0
        %625 = vmatpush1.msra.mxu0 0.0
        %626 = vmatprep.subr.mxu0 0.0
        %627 = vmatpush1.msra.mxu0 0.0
        %628 = vmatprep.subr.mxu0 0.0
        %629 = vmatpush1.msra.mxu0 0.0
        %630 = vmatprep.subr.mxu0 0.0
        %631 = vmatpush1.msra.mxu0 0.0
        %632 = vmatprep.subr.mxu0 0.0
        %633 = vmatpush1.msra.mxu0 0.0
        %634 = vmatprep.mubr.f32.mxu0 0.0
        %635 = vmatmul.mubr.f32.gmra.mrb[0].mxu0 %v568
        %v636 = vpop.f32.mrb[0].mxu0
        %v637 = vadd.f32 0.0, %v636
        %v638 = vpop.f32.mrb[0].mxu0
        %639 = vdwg.mxu0
        %v640 = vand.u32 2147483647, %v637
        %v641 = vmax.f32 %v640, 1e-12
        %v642 = vrcp.pop %v641
        %v643 = vmul.f32 %v637, %v642
        %v645 = vrot.slane %v643, 4
        %647 = vxpose.xlu0.b32.start [1/16] %v645, 128
        %648 = vxpose.xlu0.b32.cont [2/16] 0.0, 128
        %649 = vxpose.xlu0.b32.cont [3/16] 0.0, 128
        %650 = vxpose.xlu0.b32.cont [4/16] 0.0, 128
        %651 = vxpose.xlu0.b32.cont [5/16] 0.0, 128
        %652 = vxpose.xlu0.b32.cont [6/16] 0.0, 128
        %653 = vxpose.xlu0.b32.cont [7/16] 0.0, 128
        %654 = vxpose.xlu0.b32.cont [8/16] 0.0, 128
        %655 = vxpose.xlu0.b32.cont [9/16] 0.0, 128
        %656 = vxpose.xlu0.b32.cont [10/16] 0.0, 128
        %657 = vxpose.xlu0.b32.cont [11/16] 0.0, 128
        %658 = vxpose.xlu0.b32.cont [12/16] 0.0, 128
        %659 = vxpose.xlu0.b32.cont [13/16] 0.0, 128
        %660 = vxpose.xlu0.b32.cont [14/16] 0.0, 128
        %661 = vxpose.xlu0.b32.cont [15/16] 0.0, 128
        %662 = vxpose.xlu0.b32.end [16/16] 0.0, 128
        %v663 = vpop.trf.xlu0
        %v664 = vpop.trf.xlu0
        %v665 = vpop.trf.xlu0
        %v666 = vpop.trf.xlu0
        %v667 = vpop.trf.xlu0
        %v668 = vpop.trf.xlu0
        %v669 = vpop.trf.xlu0
        %v670 = vpop.trf.xlu0
        %v671 = vpop.trf.xlu0
        %v672 = vpop.trf.xlu0
        %v673 = vpop.trf.xlu0
        %v674 = vpop.trf.xlu0
        %v675 = vpop.trf.xlu0
        %v676 = vpop.trf.xlu0
        %v677 = vpop.trf.xlu0
        %v678 = vpop.trf.xlu0
        %679 = vset.pattern.permute.xlu0 0
        %680 = vperm.xlu0 %679, %v643
        %v681 = vpop.permute.xlu0 %680
        %v683 = vlaneseq
        %v684 = vshrl.u32 %v683, 7
        %v685 = vsub.s32 0, %v684
        %v686 = vrot.slane %v663, %v685
        %v687 = vmul.f32 %v681, %v686
        %v688 = vstv %s404
        %v689 = vmul.f32 %v687, %v688
        %vm690 = vcmask 27648
        %v691 = vsel %vm690, %v689, -inf
        %692 = vmax.xlane.f32.xlu0 %v691
        %v693 = vpop.xlane.xlu0 %692
        %v694 = vsub.f32 %v689, %v693
        %v695 = vmul.f32 %v694, 1.442695
        %v696 = vpow.pop %v695
        %v697 = vsel %vm690, %v696, 0.0
        %698 = vadd.xlane.f32.xlu0 %v697
        %v699 = vpop.xlane.xlu0 %698
        %v700 = vrcp.pop %v699
        %v701 = vmul.f32 %v696, %v700
        %vm702 = vcmask 31744
        %v704 = vsel %vm702, %v403, 0
        %v707 = vsel %vm410, %v701, 0
        %709 = vmatprep.subr.mxu0 0.0
        %710 = vmatpush1.msra.mxu0 %v707
        %711 = vmatprep.subr.mxu0 0.0
        %712 = vmatpush1.msra.mxu0 0.0
        %713 = vmatprep.subr.mxu0 0.0
        %714 = vmatpush1.msra.mxu0 0.0
        %715 = vmatprep.subr.mxu0 0.0
        %716 = vmatpush1.msra.mxu0 0.0
        %717 = vmatprep.subr.mxu0 0.0
        %718 = vmatpush1.msra.mxu0 0.0
        %719 = vmatprep.subr.mxu0 0.0
        %720 = vmatpush1.msra.mxu0 0.0
        %721 = vmatprep.subr.mxu0 0.0
        %722 = vmatpush1.msra.mxu0 0.0
        %723 = vmatprep.subr.mxu0 0.0
        %724 = vmatpush1.msra.mxu0 0.0
        %725 = vmatprep.subr.mxu0 0.0
        %726 = vmatpush1.msra.mxu0 0.0
        %727 = vmatprep.subr.mxu0 0.0
        %728 = vmatpush1.msra.mxu0 0.0
        %729 = vmatprep.subr.mxu0 0.0
        %730 = vmatpush1.msra.mxu0 0.0
        %731 = vmatprep.subr.mxu0 0.0
        %732 = vmatpush1.msra.mxu0 0.0
        %733 = vmatprep.subr.mxu0 0.0
        %734 = vmatpush1.msra.mxu0 0.0
        %735 = vmatprep.subr.mxu0 0.0
        %736 = vmatpush1.msra.mxu0 0.0
        %737 = vmatprep.subr.mxu0 0.0
        %738 = vmatpush1.msra.mxu0 0.0
        %739 = vmatprep.subr.mxu0 0.0
        %740 = vmatpush1.msra.mxu0 0.0
        %741 = vmatprep.subr.mxu0 0.0
        %742 = vmatpush1.msra.mxu0 0.0
        %743 = vmatprep.subr.mxu0 0.0
        %744 = vmatpush1.msra.mxu0 0.0
        %745 = vmatprep.subr.mxu0 0.0
        %746 = vmatpush1.msra.mxu0 0.0
        %747 = vmatprep.subr.mxu0 0.0
        %748 = vmatpush1.msra.mxu0 0.0
        %749 = vmatprep.subr.mxu0 0.0
        %750 = vmatpush1.msra.mxu0 0.0
        %751 = vmatprep.subr.mxu0 0.0
        %752 = vmatpush1.msra.mxu0 0.0
        %753 = vmatprep.subr.mxu0 0.0
        %754 = vmatpush1.msra.mxu0 0.0
        %755 = vmatprep.subr.mxu0 0.0
        %756 = vmatpush1.msra.mxu0 0.0
        %757 = vmatprep.subr.mxu0 0.0
        %758 = vmatpush1.msra.mxu0 0.0
        %759 = vmatprep.subr.mxu0 0.0
        %760 = vmatpush1.msra.mxu0 0.0
        %761 = vmatprep.subr.mxu0 0.0
        %762 = vmatpush1.msra.mxu0 0.0
        %763 = vmatprep.subr.mxu0 0.0
        %764 = vmatpush1.msra.mxu0 0.0
        %765 = vmatprep.subr.mxu0 0.0
        %766 = vmatpush1.msra.mxu0 0.0
        %767 = vmatprep.subr.mxu0 0.0
        %768 = vmatpush1.msra.mxu0 0.0
        %769 = vmatprep.subr.mxu0 0.0
        %770 = vmatpush1.msra.mxu0 0.0
        %771 = vmatprep.subr.mxu0 0.0
        %772 = vmatpush1.msra.mxu0 0.0
        %773 = vmatprep.mubr.f32.mxu0 0.0
        %774 = vmatmul.mubr.f32.gmra.mrb[0].mxu0 %v704
        %v775 = vpop.f32.mrb[0].mxu0
        %v776 = vadd.f32 0.0, %v775
        %v777 = vpop.f32.mrb[0].mxu0
        %778 = vdwg.mxu0
        %v780 = vsel %vm702, %v776, 0
        %v783 = vsel %vm410, %v402, 0
        %785 = vmatprep.subr.mxu0 0.0
        %786 = vmatpush1.msra.mxu0 %v783
        %787 = vmatprep.subr.mxu0 0.0
        %788 = vmatpush1.msra.mxu0 0.0
        %789 = vmatprep.subr.mxu0 0.0
        %790 = vmatpush1.msra.mxu0 0.0
        %791 = vmatprep.subr.mxu0 0.0
        %792 = vmatpush1.msra.mxu0 0.0
        %793 = vmatprep.subr.mxu0 0.0
        %794 = vmatpush1.msra.mxu0 0.0
        %795 = vmatprep.subr.mxu0 0.0
        %796 = vmatpush1.msra.mxu0 0.0
        %797 = vmatprep.subr.mxu0 0.0
        %798 = vmatpush1.msra.mxu0 0.0
        %799 = vmatprep.subr.mxu0 0.0
        %800 = vmatpush1.msra.mxu0 0.0
        %801 = vmatprep.subr.mxu0 0.0
        %802 = vmatpush1.msra.mxu0 0.0
        %803 = vmatprep.subr.mxu0 0.0
        %804 = vmatpush1.msra.mxu0 0.0
        %805 = vmatprep.subr.mxu0 0.0
        %806 = vmatpush1.msra.mxu0 0.0
        %807 = vmatprep.subr.mxu0 0.0
        %808 = vmatpush1.msra.mxu0 0.0
        %809 = vmatprep.subr.mxu0 0.0
        %810 = vmatpush1.msra.mxu0 0.0
        %811 = vmatprep.subr.mxu0 0.0
        %812 = vmatpush1.msra.mxu0 0.0
        %813 = vmatprep.subr.mxu0 0.0
        %814 = vmatpush1.msra.mxu0 0.0
        %815 = vmatprep.subr.mxu0 0.0
        %816 = vmatpush1.msra.mxu0 0.0
        %817 = vmatprep.subr.mxu0 0.0
        %818 = vmatpush1.msra.mxu0 0.0
        %819 = vmatprep.subr.mxu0 0.0
        %820 = vmatpush1.msra.mxu0 0.0
        %821 = vmatprep.subr.mxu0 0.0
        %822 = vmatpush1.msra.mxu0 0.0
        %823 = vmatprep.subr.mxu0 0.0
        %824 = vmatpush1.msra.mxu0 0.0
        %825 = vmatprep.subr.mxu0 0.0
        %826 = vmatpush1.msra.mxu0 0.0
        %827 = vmatprep.subr.mxu0 0.0
        %828 = vmatpush1.msra.mxu0 0.0
        %829 = vmatprep.subr.mxu0 0.0
        %830 = vmatpush1.msra.mxu0 0.0
        %831 = vmatprep.subr.mxu0 0.0
        %832 = vmatpush1.msra.mxu0 0.0
        %833 = vmatprep.subr.mxu0 0.0
        %834 = vmatpush1.msra.mxu0 0.0
        %835 = vmatprep.subr.mxu0 0.0
        %836 = vmatpush1.msra.mxu0 0.0
        %837 = vmatprep.subr.mxu0 0.0
        %838 = vmatpush1.msra.mxu0 0.0
        %839 = vmatprep.subr.mxu0 0.0
        %840 = vmatpush1.msra.mxu0 0.0
        %841 = vmatprep.subr.mxu0 0.0
        %842 = vmatpush1.msra.mxu0 0.0
        %843 = vmatprep.subr.mxu0 0.0
        %844 = vmatpush1.msra.mxu0 0.0
        %845 = vmatprep.subr.mxu0 0.0
        %846 = vmatpush1.msra.mxu0 0.0
        %847 = vmatprep.subr.mxu0 0.0
        %848 = vmatpush1.msra.mxu0 0.0
        %849 = vmatprep.mubr.f32.mxu0 0.0
        %850 = vmatmul.mubr.f32.gmra.mrb[0].mxu0 %v780
        %v851 = vpop.f32.mrb[0].mxu0
        %v852 = vadd.f32 0.0, %v851
        %v853 = vpop.f32.mrb[0].mxu0
        %854 = vdwg.mxu0
        %856 = vrot.lane.b32.xlu0 %v852, 124
        %v857 = vpop.permute.xlu0 %856
        %v858 = vsel %vm702, %v857, 0
        %v861 = vsel %vm410, %v547, 0
        %v864 = vsel %vm410, %v548, 0
        %866 = vmatprep.subr.mxu0 %v864
        %867 = vmatpush1.msra.mxu0 %v861
        %868 = vmatprep.subr.mxu0 0.0
        %869 = vmatpush1.msra.mxu0 0.0
        %870 = vmatprep.subr.mxu0 0.0
        %871 = vmatpush1.msra.mxu0 0.0
        %872 = vmatprep.subr.mxu0 0.0
        %873 = vmatpush1.msra.mxu0 0.0
        %874 = vmatprep.subr.mxu0 0.0
        %875 = vmatpush1.msra.mxu0 0.0
        %876 = vmatprep.subr.mxu0 0.0
        %877 = vmatpush1.msra.mxu0 0.0
        %878 = vmatprep.subr.mxu0 0.0
        %879 = vmatpush1.msra.mxu0 0.0
        %880 = vmatprep.subr.mxu0 0.0
        %881 = vmatpush1.msra.mxu0 0.0
        %882 = vmatprep.subr.mxu0 0.0
        %883 = vmatpush1.msra.mxu0 0.0
        %884 = vmatprep.subr.mxu0 0.0
        %885 = vmatpush1.msra.mxu0 0.0
        %886 = vmatprep.subr.mxu0 0.0
        %887 = vmatpush1.msra.mxu0 0.0
        %888 = vmatprep.subr.mxu0 0.0
        %889 = vmatpush1.msra.mxu0 0.0
        %890 = vmatprep.subr.mxu0 0.0
        %891 = vmatpush1.msra.mxu0 0.0
        %892 = vmatprep.subr.mxu0 0.0
        %893 = vmatpush1.msra.mxu0 0.0
        %894 = vmatprep.subr.mxu0 0.0
        %895 = vmatpush1.msra.mxu0 0.0
        %896 = vmatprep.subr.mxu0 0.0
        %897 = vmatpush1.msra.mxu0 0.0
        %898 = vmatprep.subr.mxu0 0.0
        %899 = vmatpush1.msra.mxu0 0.0
        %900 = vmatprep.subr.mxu0 0.0
        %901 = vmatpush1.msra.mxu0 0.0
        %902 = vmatprep.subr.mxu0 0.0
        %903 = vmatpush1.msra.mxu0 0.0
        %904 = vmatprep.subr.mxu0 0.0
        %905 = vmatpush1.msra.mxu0 0.0
        %906 = vmatprep.subr.mxu0 0.0
        %907 = vmatpush1.msra.mxu0 0.0
        %908 = vmatprep.subr.mxu0 0.0
        %909 = vmatpush1.msra.mxu0 0.0
        %910 = vmatprep.subr.mxu0 0.0
        %911 = vmatpush1.msra.mxu0 0.0
        %912 = vmatprep.subr.mxu0 0.0
        %913 = vmatpush1.msra.mxu0 0.0
        %914 = vmatprep.subr.mxu0 0.0
        %915 = vmatpush1.msra.mxu0 0.0
        %916 = vmatprep.subr.mxu0 0.0
        %917 = vmatpush1.msra.mxu0 0.0
        %918 = vmatprep.subr.mxu0 0.0
        %919 = vmatpush1.msra.mxu0 0.0
        %920 = vmatprep.subr.mxu0 0.0
        %921 = vmatpush1.msra.mxu0 0.0
        %922 = vmatprep.subr.mxu0 0.0
        %923 = vmatpush1.msra.mxu0 0.0
        %924 = vmatprep.subr.mxu0 0.0
        %925 = vmatpush1.msra.mxu0 0.0
        %926 = vmatprep.subr.mxu0 0.0
        %927 = vmatpush1.msra.mxu0 0.0
        %928 = vmatprep.subr.mxu0 0.0
        %929 = vmatpush1.msra.mxu0 0.0
        %930 = vmatprep.mubr.f32.mxu0 0.0
        %931 = vmatmul.mubr.f32.gmra.mrb[0].mxu0 %v858
        %v932 = vpop.f32.mrb[0].mxu0
        %v933 = vadd.f32 0.0, %v932
        %v934 = vpop.f32.mrb[0].mxu0
        %v935 = vadd.f32 0.0, %v934
        %936 = vdwg.mxu0
        %v937 = vsel %vm702, %v852, 0
        %v940 = vsel %vm410, %v477, 0
        %v943 = vsel %vm410, %v478, 0
        %945 = vmatprep.subr.mxu0 %v943
        %946 = vmatpush1.msra.mxu0 %v940
        %947 = vmatprep.subr.mxu0 0.0
        %948 = vmatpush1.msra.mxu0 0.0
        %949 = vmatprep.subr.mxu0 0.0
        %950 = vmatpush1.msra.mxu0 0.0
        %951 = vmatprep.subr.mxu0 0.0
        %952 = vmatpush1.msra.mxu0 0.0
        %953 = vmatprep.subr.mxu0 0.0
        %954 = vmatpush1.msra.mxu0 0.0
        %955 = vmatprep.subr.mxu0 0.0
        %956 = vmatpush1.msra.mxu0 0.0
        %957 = vmatprep.subr.mxu0 0.0
        %958 = vmatpush1.msra.mxu0 0.0
        %959 = vmatprep.subr.mxu0 0.0
        %960 = vmatpush1.msra.mxu0 0.0
        %961 = vmatprep.subr.mxu0 0.0
        %962 = vmatpush1.msra.mxu0 0.0
        %963 = vmatprep.subr.mxu0 0.0
        %964 = vmatpush1.msra.mxu0 0.0
        %965 = vmatprep.subr.mxu0 0.0
        %966 = vmatpush1.msra.mxu0 0.0
        %967 = vmatprep.subr.mxu0 0.0
        %968 = vmatpush1.msra.mxu0 0.0
        %969 = vmatprep.subr.mxu0 0.0
        %970 = vmatpush1.msra.mxu0 0.0
        %971 = vmatprep.subr.mxu0 0.0
        %972 = vmatpush1.msra.mxu0 0.0
        %973 = vmatprep.subr.mxu0 0.0
        %974 = vmatpush1.msra.mxu0 0.0
        %975 = vmatprep.subr.mxu0 0.0
        %976 = vmatpush1.msra.mxu0 0.0
        %977 = vmatprep.subr.mxu0 0.0
        %978 = vmatpush1.msra.mxu0 0.0
        %979 = vmatprep.subr.mxu0 0.0
        %980 = vmatpush1.msra.mxu0 0.0
        %981 = vmatprep.subr.mxu0 0.0
        %982 = vmatpush1.msra.mxu0 0.0
        %983 = vmatprep.subr.mxu0 0.0
        %984 = vmatpush1.msra.mxu0 0.0
        %985 = vmatprep.subr.mxu0 0.0
        %986 = vmatpush1.msra.mxu0 0.0
        %987 = vmatprep.subr.mxu0 0.0
        %988 = vmatpush1.msra.mxu0 0.0
        %989 = vmatprep.subr.mxu0 0.0
        %990 = vmatpush1.msra.mxu0 0.0
        %991 = vmatprep.subr.mxu0 0.0
        %992 = vmatpush1.msra.mxu0 0.0
        %993 = vmatprep.subr.mxu0 0.0
        %994 = vmatpush1.msra.mxu0 0.0
        %995 = vmatprep.subr.mxu0 0.0
        %996 = vmatpush1.msra.mxu0 0.0
        %997 = vmatprep.subr.mxu0 0.0
        %998 = vmatpush1.msra.mxu0 0.0
        %999 = vmatprep.subr.mxu0 0.0
        %1000 = vmatpush1.msra.mxu0 0.0
        %1001 = vmatprep.subr.mxu0 0.0
        %1002 = vmatpush1.msra.mxu0 0.0
        %1003 = vmatprep.subr.mxu0 0.0
        %1004 = vmatpush1.msra.mxu0 0.0
        %1005 = vmatprep.subr.mxu0 0.0
        %1006 = vmatpush1.msra.mxu0 0.0
        %1007 = vmatprep.subr.mxu0 0.0
        %1008 = vmatpush1.msra.mxu0 0.0
        %1009 = vmatprep.mubr.f32.mxu0 0.0
        %1010 = vmatmul.mubr.f32.gmra.mrb[0].mxu0 %v937
        %v1011 = vpop.f32.mrb[0].mxu0
        %v1012 = vadd.f32 %v933, %v1011
        %v1013 = vpop.f32.mrb[0].mxu0
        %v1014 = vadd.f32 %v935, %v1013
        %1015 = vdwg.mxu0
        %v1018 = vcombine.low %v1012, %v1014
        %1020 = vst [vmem:[%s391] sm:$0xff] %v1018
        %s1021 = sand.u32 %s256, 1
        %s1022 = scalar_lea.sflag [#allocation5], %s1021
        %s1023 = sand.u32 %s256, 1
        %s1024 = smul.addr %s1023, 8
        %s1025 = scalar_lea.vmem [#allocation6], %s1024
        // Predicated region
        $region65: #{tpu_custom_call.1} parent=59 // pred_check
          %p1026 = pneg %p266
        $region66: #{tpu_custom_call.1} parent=59 // pred_check_branch
          %1028 = sbr.rel (%p1026) target = $region68
        $region67: #{tpu_custom_call.1} parent=59 // pred_region
          %s1030 = ssub.s32 128, 128
          %1031 = vsyncadd %s1022, %s1030
          %s1032 = smul.addr %s28, 2
          %s1033 = smul.addr %s1032, 64
          %s1034 = scalar_lea.hbm %s10, %s1033
          %s1036 = sshll.u32 %s1025, 4
          %s1037 = int_to_ptr.vmem [resolvable:$true] %s1036
          %1039 = dma.vmem_to_hbm [thread:$0]  %s1037, 128, %s1034, %s1022
        $region68: #{tpu_custom_call.1} parent=59 // pred_fallthru
          _
      $region60: #{tpu_custom_call.1} parent=5 // pred_fallthru
        _
      %p1040 = scmp.le.s32.totalorder 2, %s23
      // Predicated region
      $region69: #{tpu_custom_call.1} parent=5 // pred_check
        %p1041 = pneg %p1040
      $region70: #{tpu_custom_call.1} parent=5 // pred_check_branch
        %1043 = sbr.rel (%p1041) target = $region72
      $region71: #{tpu_custom_call.1} parent=5 // pred_region
        %s1044 = ssub.s32 %s23, 2
        // Predicated region
        $region73: #{tpu_custom_call.1} parent=71 // pred_check
          %p1045 = pneg %p272
        $region74: #{tpu_custom_call.1} parent=71 // pred_check_branch
          %1047 = sbr.rel (%p1045) target = $region76
        $region75: #{tpu_custom_call.1} parent=71 // pred_region
          %s1048 = sand.u32 %s257, 1
          %s1049 = scalar_lea.sflag [#allocation5], %s1048
          %s1050 = sand.u32 %s257, 1
          %s1051 = smul.addr %s1050, 8
          %s1052 = scalar_lea.vmem [#allocation6], %s1051
          %1053 = dma.done %s1049, 128
        $region76: #{tpu_custom_call.1} parent=71 // pred_fallthru
          _
      $region72: #{tpu_custom_call.1} parent=5 // pred_fallthru
        _
    $region6: #{tpu_custom_call.1} parent=1 // loop_footer
      %s27 = sadd.s32 1, %s23
    $region7: #{tpu_custom_call.1} parent=1 // loop_footer_branch
      %22 = sbr.rel target = $region3
    $region8: #{tpu_custom_call.1} parent=1 // loop_exit
      _
    %1054 = vsyncpa [#allocation4], 1
    %s1055 = scalar_lea.sflag [#allocation4], 1
    %1056 = vsyncpa %s1055, 1
    %1057 = vsyncpa [#allocation5], 1
    %s1058 = scalar_lea.sflag [#allocation5], 1
    %1059 = vsyncpa %s1058, 1

</llo_original>
